<compile_context>
chip_gen: v6e
topology: v6e:2x2x1
jax: 0.10.0
libtpu: 0.0.40
codegen_flags: <defaults>
</compile_context>

<pallas_src>
import functools

import jax
import jax.numpy as jnp
from jax.experimental import pallas as pl
from jax.experimental.pallas import tpu as pltpu


_NUM_CH = 9  # dirs(3) + cross(3) + viewdirs(3)


def _plucker_kernel(params_ref, out_ref, *, W, TB, TN):
    """One grid step: TB cameras x TN pixels.

    params_ref: VMEM (TB, 16) f32
        cols: 0 inv_fx, 1 inv_fy, 2 cx-1.0, 3 cy-1.0, 4..12 R (row-major 3x3), 13..15 t.
    out_ref:    VMEM (9*TB, TN) f32, rows [c*TB, (c+1)*TB) = channel c.
    """
    n_idx = pl.program_id(1)

    # Pixel coordinates from a single (1, TN) lane iota (broadcast over sublanes).
    lane = jax.lax.broadcasted_iota(jnp.int32, (1, TN), 1) + n_idx * TN
    if (W & (W - 1)) == 0:
        shift = W.bit_length() - 1
        yi = lane >> shift
        xi = lane & (W - 1)
    else:
        yi = lane // W                     # single int div on a (1, TN) row only
        xi = lane - yi * W
    x = xi.astype(jnp.float32)             # (1, TN); the +0.5's are folded into cx-1/cy-1
    y = yi.astype(jnp.float32)

    col = lambda j: params_ref[:, j:j + 1]  # (TB, 1), lane-broadcast below
    inv_fx, inv_fy, cxo, cyo = col(0), col(1), col(2), col(3)
    r = [[col(4 + 3 * i + j) for j in range(3)] for i in range(3)]
    t = [col(13 + i) for i in range(3)]

    # camera_dirs (z component implicitly 1.0).  No divides: reciprocals pre-folded.
    dx = (x - cxo) * inv_fx                # (TB, TN)
    dy = (y - cyo) * inv_fy

    # directions[i] = camera_dirs . R[i, :] — keep on the VPU (3x3 would waste the MXU).
    d = [dx * r[i][0] + dy * r[i][1] + r[i][2] for i in range(3)]

    norm = jnp.sqrt(d[0] * d[0] + d[1] * d[1] + d[2] * d[2])
    inv = pl.reciprocal(norm + 1e-8, approx=False)   # EUP slot; VALU stays free
    v = [d[i] * inv for i in range(3)]

    # cross(origins, viewdirs) with origins == t (constant per camera)
    c0 = t[1] * v[2] - t[2] * v[1]
    c1 = t[2] * v[0] - t[0] * v[2]
    c2 = t[0] * v[1] - t[1] * v[0]

    # Direct slice stores into the flattened block (single writeback DMA per step).
    planes = (d[0], d[1], d[2], c0, c1, c2, v[0], v[1], v[2])
    for c, plane in enumerate(planes):
        out_ref[pl.ds(c * TB, TB), :] = plane


def _largest_tile(n_pad, cap):
    """Largest multiple of 128 that divides n_pad and is <= cap (n_pad % 128 == 0)."""
    cap = max(128, min(cap, n_pad))
    best = 128
    t = 128
    while t <= cap:
        if n_pad % t == 0:
            best = t
        t += 128
    return best


def _choose_tiles(B, N):
    """Pick (TB, B_pad, TN, N_pad).  ~6 MiB output block (double-buffered ~12 MiB)."""
    N_pad = ((N + 127) // 128) * 128
    budget = 6 * 1024 * 1024

    if B <= 8:
        TB = max(B, 1)
        B_pad = TB
    else:
        TB = min(32, ((B + 7) // 8) * 8)   # multiple of 8 for sublane alignment
        B_pad = ((B + TB - 1) // TB) * TB

    lane_cap = max(128, (budget // (_NUM_CH * TB * 4)) // 128 * 128)
    TN = _largest_tile(N_pad, lane_cap)

    # v7x has 2 TensorCores: expose >= 2 grid steps along a parallel axis when possible.
    if (B_pad // TB) * (N_pad // TN) < 2 and N_pad >= 256:
        TN = _largest_tile(N_pad, max(128, N_pad // 2))
    return TB, B_pad, TN, N_pad


@functools.partial(jax.jit, static_argnames=("img_size", "patch_size"))
def plucker_embedder(intrinsics, camtoworlds, img_size=16, patch_size=1):
    """Pallas implementation of PluckerEmbedder.forward (default image_size=None path).

    intrinsics : (..., 3, 3) f32
    camtoworlds: (..., 4, 4) f32
    returns dict of origins/viewdirs/dirs (..., H, W, 3), plucker (..., H, W, 6)
    """
    lead_shape = intrinsics.shape[:-2]
    H = W = img_size // patch_size
    N = H * W

    intr = intrinsics.reshape(-1, 3, 3).astype(jnp.float32)
    ctw = camtoworlds.reshape(-1, 4, 4).astype(jnp.float32)
    B = intr.shape[0]

    # Per-camera scalars packed into one 16-wide row (intrinsics pre-folded on host):
    # [1/fx, 1/fy, cx-1, cy-1, r00..r22 (row-major), t0, t1, t2]
    fx = intr[:, 0, 0]
    fy = intr[:, 1, 1]
    cx = intr[:, 0, 2]
    cy = intr[:, 1, 2]
    params = jnp.concatenate(
        [(1.0 / fx)[:, None], (1.0 / fy)[:, None],
         (cx - 1.0)[:, None], (cy - 1.0)[:, None],
         ctw[:, :3, :3].reshape(B, 9), ctw[:, :3, 3]], axis=1)      # (B, 16)

    TB, B_pad, TN, N_pad = _choose_tiles(B, N)
    if B_pad > B:
        # inv_fx = inv_fy = 1 in padded rows (finite math); results are sliced away.
        pad = jnp.zeros((B_pad - B, 16), jnp.float32).at[:, 0:2].set(1.0)
        params = jnp.concatenate([params, pad], axis=0)

    GB, GN = B_pad // TB, N_pad // TN

    slab = pl.pallas_call(
        functools.partial(_plucker_kernel, W=W, TB=TB, TN=TN),
        out_shape=jax.ShapeDtypeStruct((GB * _NUM_CH * TB, N_pad), jnp.float32),
        grid=(GB, GN),
        in_specs=[pl.BlockSpec((TB, 16), lambda b, n: (b, 0))],
        out_specs=pl.BlockSpec((_NUM_CH * TB, TN), lambda b, n: (b, n)),
        compiler_params=pltpu.CompilerParams(
            dimension_semantics=("parallel", "parallel"),
            vmem_limit_bytes=32 * 1024 * 1024),
        cost_estimate=pl.CostEstimate(
            flops=45 * B_pad * N_pad,
            transcendentals=2 * B_pad * N_pad,
            bytes_accessed=_NUM_CH * B_pad * N_pad * 4 + B_pad * 16 * 4),
    )(params)

    # One transpose of the reduced 9-channel slab; all channel extractions are slices.
    slab = slab.reshape(GB, _NUM_CH, TB, N_pad)
    slab = jnp.transpose(slab, (0, 2, 3, 1)).reshape(B_pad, N_pad, _NUM_CH)
    slab = slab[:B, :N]

    dirs = slab[..., 0:3].reshape(*lead_shape, H, W, 3)
    plucker = slab[..., 3:9].reshape(*lead_shape, H, W, 6)     # (cross | viewdirs), contiguous
    viewdirs = slab[..., 6:9].reshape(*lead_shape, H, W, 3)
    # origins are a pure per-camera broadcast of t — reconstruct in the wrapper (tiny).
    origins = jnp.broadcast_to(ctw[:, None, :3, 3], (B, N, 3)).reshape(*lead_shape, H, W, 3)

    # TODO(synk): the runtime image_size/patch_size-override branch of forward() (which
    # rescales fx/cx/fy/cy by patch_size when the grid differs from the module default)
    # is host-side wrapper logic and is not reproduced here; this implements the default
    # image_size=None path.
    return {"origins": origins, "viewdirs": viewdirs, "dirs": dirs, "plucker": plucker}


def _make_xy(grid_size):
    """torch.meshgrid(arange(W), arange(H), indexing='xy') flattened + 0.5."""
    H, W = grid_size
    xs = jnp.tile(jnp.arange(W, dtype=jnp.float32) + 0.5, H)      # x[n] = (n % W) + 0.5
    ys = jnp.repeat(jnp.arange(H, dtype=jnp.float32) + 0.5, W)    # y[n] = (n // W) + 0.5
    return jnp.stack([xs, ys], axis=0)                            # (2, N)


def _reference(intrinsics, camtoworlds, img_size=16, patch_size=1):
    """Pure-JAX transcription of the PyTorch forward (for verification)."""
    lead_shape = intrinsics.shape[:-2]
    H = W = img_size // patch_size
    intr = intrinsics.reshape(-1, 3, 3)
    ctw = camtoworlds.reshape(-1, 4, 4)
    B = intr.shape[0]
    xy = _make_xy((H, W))
    x = jnp.broadcast_to(xy[0], (B, H * W))
    y = jnp.broadcast_to(xy[1], (B, H * W))
    fx = intr[:, 0, 0][:, None]
    cx = intr[:, 0, 2][:, None]
    fy = intr[:, 1, 1][:, None]
    cy = intr[:, 1, 2][:, None]
    cam_dirs = jnp.stack(
        [(x - cx + 0.5) / fx, (y - cy + 0.5) / fy, jnp.ones_like(x)], axis=-1)
    directions = jnp.sum(cam_dirs[:, :, None, :] * ctw[:, None, :3, :3], axis=-1)
    origins = jnp.broadcast_to(ctw[:, None, :3, 3], directions.shape)
    norm = jnp.linalg.norm(directions, axis=-1, keepdims=True)
    viewdirs = directions / (norm + 1e-8)
    cross = jnp.cross(origins, viewdirs)
    plucker = jnp.concatenate([cross, viewdirs], axis=-1)

    def r(a, c):
        return a.reshape(*lead_shape, H, W, c)

    return {"origins": r(origins, 3), "viewdirs": r(viewdirs, 3),
            "dirs": r(directions, 3), "plucker": r(plucker, 6)}


if __name__ == "__main__":
    key = jax.random.PRNGKey(0)
    B = 2
    IMG = 16  # grid_size = (16, 16), N = 256

    k1, k2, k3 = jax.random.split(key, 3)

    # Deterministic synthetic intrinsics: fx, fy ~ 20, principal point near center.
    fxy = 20.0 + jax.random.uniform(k1, (B, 2), dtype=jnp.float32)
    intrinsics = jnp.zeros((B, 3, 3), dtype=jnp.float32)
    intrinsics = intrinsics.at[:, 0, 0].set(fxy[:, 0])
    intrinsics = intrinsics.at[:, 1, 1].set(fxy[:, 1])
    intrinsics = intrinsics.at[:, 0, 2].set(IMG / 2.0)
    intrinsics = intrinsics.at[:, 1, 2].set(IMG / 2.0)
    intrinsics = intrinsics.at[:, 2, 2].set(1.0)

    # Deterministic synthetic cam-to-world: random 3x3 block + translation,
    # bottom row [0, 0, 0, 1].
    R = jax.random.normal(k2, (B, 3, 3), dtype=jnp.float32)
    t = jax.random.normal(k3, (B, 3), dtype=jnp.float32)
    camtoworlds = jnp.zeros((B, 4, 4), dtype=jnp.float32)
    camtoworlds = camtoworlds.at[:, :3, :3].set(R)
    camtoworlds = camtoworlds.at[:, :3, 3].set(t)
    camtoworlds = camtoworlds.at[:, 3, 3].set(1.0)

    out = plucker_embedder(intrinsics, camtoworlds, img_size=IMG, patch_size=1)
    out = jax.block_until_ready(out)

    ref = _reference(intrinsics, camtoworlds, img_size=IMG, patch_size=1)
    for name in ("origins", "viewdirs", "dirs", "plucker"):
        assert out[name].shape == ref[name].shape, (name, out[name].shape, ref[name].shape)
        assert jnp.allclose(out[name], ref[name], atol=1e-5, rtol=1e-5), name

    print("KERNEL_OK")
</pallas_src>

<mosaic_0001>
module attributes {stable_mosaic.version = 11 : i64} {
  func.func @_plucker_kernel(%arg0: i32, %arg1: i32, %arg2: memref<2x16xf32, #tpu.memory_space<vmem>>, %arg3: memref<18x128xf32, #tpu.memory_space<vmem>>) attributes {dimension_semantics = [#tpu.dimension_semantics<parallel>, #tpu.dimension_semantics<parallel>], iteration_bounds = array<i64: 1, 2>, scalar_prefetch = 0 : i64, scratch_operands = 0 : i64, tpu.core_type = #tpu.core_type<tc>, window_params = [{transform_indices = @transform_0, window_bounds = array<i64: 2, 16>}, {transform_indices = @transform_1, window_bounds = array<i64: 18, 128>}]} {
    %0 = tpu.iota {dimensions = array<i32: 1>} : vector<1x128xi32>
    %c128_i32 = arith.constant 128 : i32
    %1 = arith.muli %arg1, %c128_i32 : i32
    %2 = vector.broadcast %1 : i32 to vector<1x128xi32>
    %3 = arith.addi %0, %2 : vector<1x128xi32>
    %c4_i32 = arith.constant 4 : i32
    %4 = vector.broadcast %c4_i32 : i32 to vector<1x128xi32>
    %5 = arith.shrsi %3, %4 : vector<1x128xi32>
    %c15_i32 = arith.constant 15 : i32
    %6 = vector.broadcast %c15_i32 : i32 to vector<1x128xi32>
    %7 = arith.andi %3, %6 : vector<1x128xi32>
    %8 = arith.sitofp %7 : vector<1x128xi32> to vector<1x128xf32>
    %9 = arith.sitofp %5 : vector<1x128xi32> to vector<1x128xf32>
    %c0 = arith.constant 0 : index
    %c0_0 = arith.constant 0 : index
    %10 = vector.load %arg2[%c0, %c0_0] : memref<2x16xf32, #tpu.memory_space<vmem>>, vector<2x1xf32>
    %c0_1 = arith.constant 0 : index
    %c1 = arith.constant 1 : index
    %11 = vector.load %arg2[%c0_1, %c1] : memref<2x16xf32, #tpu.memory_space<vmem>>, vector<2x1xf32>
    %c0_2 = arith.constant 0 : index
    %c2 = arith.constant 2 : index
    %12 = vector.load %arg2[%c0_2, %c2] : memref<2x16xf32, #tpu.memory_space<vmem>>, vector<2x1xf32>
    %c0_3 = arith.constant 0 : index
    %c3 = arith.constant 3 : index
    %13 = vector.load %arg2[%c0_3, %c3] : memref<2x16xf32, #tpu.memory_space<vmem>>, vector<2x1xf32>
    %c0_4 = arith.constant 0 : index
    %c4 = arith.constant 4 : index
    %14 = vector.load %arg2[%c0_4, %c4] : memref<2x16xf32, #tpu.memory_space<vmem>>, vector<2x1xf32>
    %c0_5 = arith.constant 0 : index
    %c5 = arith.constant 5 : index
    %15 = vector.load %arg2[%c0_5, %c5] : memref<2x16xf32, #tpu.memory_space<vmem>>, vector<2x1xf32>
    %c0_6 = arith.constant 0 : index
    %c6 = arith.constant 6 : index
    %16 = vector.load %arg2[%c0_6, %c6] : memref<2x16xf32, #tpu.memory_space<vmem>>, vector<2x1xf32>
    %c0_7 = arith.constant 0 : index
    %c7 = arith.constant 7 : index
    %17 = vector.load %arg2[%c0_7, %c7] : memref<2x16xf32, #tpu.memory_space<vmem>>, vector<2x1xf32>
    %c0_8 = arith.constant 0 : index
    %c8 = arith.constant 8 : index
    %18 = vector.load %arg2[%c0_8, %c8] : memref<2x16xf32, #tpu.memory_space<vmem>>, vector<2x1xf32>
    %c0_9 = arith.constant 0 : index
    %c9 = arith.constant 9 : index
    %19 = vector.load %arg2[%c0_9, %c9] : memref<2x16xf32, #tpu.memory_space<vmem>>, vector<2x1xf32>
    %c0_10 = arith.constant 0 : index
    %c10 = arith.constant 10 : index
    %20 = vector.load %arg2[%c0_10, %c10] : memref<2x16xf32, #tpu.memory_space<vmem>>, vector<2x1xf32>
    %c0_11 = arith.constant 0 : index
    %c11 = arith.constant 11 : index
    %21 = vector.load %arg2[%c0_11, %c11] : memref<2x16xf32, #tpu.memory_space<vmem>>, vector<2x1xf32>
    %c0_12 = arith.constant 0 : index
    %c12 = arith.constant 12 : index
    %22 = vector.load %arg2[%c0_12, %c12] : memref<2x16xf32, #tpu.memory_space<vmem>>, vector<2x1xf32>
    %c0_13 = arith.constant 0 : index
    %c13 = arith.constant 13 : index
    %23 = vector.load %arg2[%c0_13, %c13] : memref<2x16xf32, #tpu.memory_space<vmem>>, vector<2x1xf32>
    %c0_14 = arith.constant 0 : index
    %c14 = arith.constant 14 : index
    %24 = vector.load %arg2[%c0_14, %c14] : memref<2x16xf32, #tpu.memory_space<vmem>>, vector<2x1xf32>
    %c0_15 = arith.constant 0 : index
    %c15 = arith.constant 15 : index
    %25 = vector.load %arg2[%c0_15, %c15] : memref<2x16xf32, #tpu.memory_space<vmem>>, vector<2x1xf32>
    %26 = vector.broadcast %8 : vector<1x128xf32> to vector<2x128xf32>
    %27 = vector.broadcast %12 : vector<2x1xf32> to vector<2x128xf32>
    %28 = arith.subf %26, %27 : vector<2x128xf32>
    %29 = vector.broadcast %10 : vector<2x1xf32> to vector<2x128xf32>
    %30 = arith.mulf %28, %29 : vector<2x128xf32>
    %31 = vector.broadcast %9 : vector<1x128xf32> to vector<2x128xf32>
    %32 = vector.broadcast %13 : vector<2x1xf32> to vector<2x128xf32>
    %33 = arith.subf %31, %32 : vector<2x128xf32>
    %34 = vector.broadcast %11 : vector<2x1xf32> to vector<2x128xf32>
    %35 = arith.mulf %33, %34 : vector<2x128xf32>
    %36 = vector.broadcast %14 : vector<2x1xf32> to vector<2x128xf32>
    %37 = arith.mulf %30, %36 : vector<2x128xf32>
    %38 = vector.broadcast %15 : vector<2x1xf32> to vector<2x128xf32>
    %39 = arith.mulf %35, %38 : vector<2x128xf32>
    %40 = arith.addf %37, %39 : vector<2x128xf32>
    %41 = vector.broadcast %16 : vector<2x1xf32> to vector<2x128xf32>
    %42 = arith.addf %40, %41 : vector<2x128xf32>
    %43 = vector.broadcast %17 : vector<2x1xf32> to vector<2x128xf32>
    %44 = arith.mulf %30, %43 : vector<2x128xf32>
    %45 = vector.broadcast %18 : vector<2x1xf32> to vector<2x128xf32>
    %46 = arith.mulf %35, %45 : vector<2x128xf32>
    %47 = arith.addf %44, %46 : vector<2x128xf32>
    %48 = vector.broadcast %19 : vector<2x1xf32> to vector<2x128xf32>
    %49 = arith.addf %47, %48 : vector<2x128xf32>
    %50 = vector.broadcast %20 : vector<2x1xf32> to vector<2x128xf32>
    %51 = arith.mulf %30, %50 : vector<2x128xf32>
    %52 = vector.broadcast %21 : vector<2x1xf32> to vector<2x128xf32>
    %53 = arith.mulf %35, %52 : vector<2x128xf32>
    %54 = arith.addf %51, %53 : vector<2x128xf32>
    %55 = vector.broadcast %22 : vector<2x1xf32> to vector<2x128xf32>
    %56 = arith.addf %54, %55 : vector<2x128xf32>
    %57 = arith.mulf %42, %42 : vector<2x128xf32>
    %58 = arith.mulf %49, %49 : vector<2x128xf32>
    %59 = arith.addf %57, %58 : vector<2x128xf32>
    %60 = arith.mulf %56, %56 : vector<2x128xf32>
    %61 = arith.addf %59, %60 : vector<2x128xf32>
    %62 = math.sqrt %61 : vector<2x128xf32>
    %cst = arith.constant 9.99999993E-9 : f32
    %63 = vector.broadcast %cst : f32 to vector<2x128xf32>
    %64 = arith.addf %62, %63 : vector<2x128xf32>
    %65 = tpu.reciprocal %64 : vector<2x128xf32> -> vector<2x128xf32>
    %66 = arith.mulf %42, %65 : vector<2x128xf32>
    %67 = arith.mulf %49, %65 : vector<2x128xf32>
    %68 = arith.mulf %56, %65 : vector<2x128xf32>
    %69 = vector.broadcast %24 : vector<2x1xf32> to vector<2x128xf32>
    %70 = arith.mulf %69, %68 : vector<2x128xf32>
    %71 = vector.broadcast %25 : vector<2x1xf32> to vector<2x128xf32>
    %72 = arith.mulf %71, %67 : vector<2x128xf32>
    %73 = arith.subf %70, %72 : vector<2x128xf32>
    %74 = vector.broadcast %25 : vector<2x1xf32> to vector<2x128xf32>
    %75 = arith.mulf %74, %66 : vector<2x128xf32>
    %76 = vector.broadcast %23 : vector<2x1xf32> to vector<2x128xf32>
    %77 = arith.mulf %76, %68 : vector<2x128xf32>
    %78 = arith.subf %75, %77 : vector<2x128xf32>
    %79 = vector.broadcast %23 : vector<2x1xf32> to vector<2x128xf32>
    %80 = arith.mulf %79, %67 : vector<2x128xf32>
    %81 = vector.broadcast %24 : vector<2x1xf32> to vector<2x128xf32>
    %82 = arith.mulf %81, %66 : vector<2x128xf32>
    %83 = arith.subf %80, %82 : vector<2x128xf32>
    %c0_16 = arith.constant 0 : index
    %c0_17 = arith.constant 0 : index
    %84 = vector.load %arg3[%c0_16, %c0_17] : memref<18x128xf32, #tpu.memory_space<vmem>>, vector<2x128xf32>
    tpu.vector_store %arg3[%c0_16, %c0_17], %42 {strides = array<i32>} : memref<18x128xf32, #tpu.memory_space<vmem>>, vector<2x128xf32>,
    %c2_18 = arith.constant 2 : index
    %c0_19 = arith.constant 0 : index
    %85 = vector.load %arg3[%c2_18, %c0_19] : memref<18x128xf32, #tpu.memory_space<vmem>>, vector<2x128xf32>
    tpu.vector_store %arg3[%c2_18, %c0_19], %49 {strides = array<i32>} : memref<18x128xf32, #tpu.memory_space<vmem>>, vector<2x128xf32>,
    %c4_20 = arith.constant 4 : index
    %c0_21 = arith.constant 0 : index
    %86 = vector.load %arg3[%c4_20, %c0_21] : memref<18x128xf32, #tpu.memory_space<vmem>>, vector<2x128xf32>
    tpu.vector_store %arg3[%c4_20, %c0_21], %56 {strides = array<i32>} : memref<18x128xf32, #tpu.memory_space<vmem>>, vector<2x128xf32>,
    %c6_22 = arith.constant 6 : index
    %c0_23 = arith.constant 0 : index
    %87 = vector.load %arg3[%c6_22, %c0_23] : memref<18x128xf32, #tpu.memory_space<vmem>>, vector<2x128xf32>
    tpu.vector_store %arg3[%c6_22, %c0_23], %73 {strides = array<i32>} : memref<18x128xf32, #tpu.memory_space<vmem>>, vector<2x128xf32>,
    %c8_24 = arith.constant 8 : index
    %c0_25 = arith.constant 0 : index
    %88 = vector.load %arg3[%c8_24, %c0_25] : memref<18x128xf32, #tpu.memory_space<vmem>>, vector<2x128xf32>
    tpu.vector_store %arg3[%c8_24, %c0_25], %78 {strides = array<i32>} : memref<18x128xf32, #tpu.memory_space<vmem>>, vector<2x128xf32>,
    %c10_26 = arith.constant 10 : index
    %c0_27 = arith.constant 0 : index
    %89 = vector.load %arg3[%c10_26, %c0_27] : memref<18x128xf32, #tpu.memory_space<vmem>>, vector<2x128xf32>
    tpu.vector_store %arg3[%c10_26, %c0_27], %83 {strides = array<i32>} : memref<18x128xf32, #tpu.memory_space<vmem>>, vector<2x128xf32>,
    %c12_28 = arith.constant 12 : index
    %c0_29 = arith.constant 0 : index
    %90 = vector.load %arg3[%c12_28, %c0_29] : memref<18x128xf32, #tpu.memory_space<vmem>>, vector<2x128xf32>
    tpu.vector_store %arg3[%c12_28, %c0_29], %66 {strides = array<i32>} : memref<18x128xf32, #tpu.memory_space<vmem>>, vector<2x128xf32>,
    %c14_30 = arith.constant 14 : index
    %c0_31 = arith.constant 0 : index
    %91 = vector.load %arg3[%c14_30, %c0_31] : memref<18x128xf32, #tpu.memory_space<vmem>>, vector<2x128xf32>
    tpu.vector_store %arg3[%c14_30, %c0_31], %67 {strides = array<i32>} : memref<18x128xf32, #tpu.memory_space<vmem>>, vector<2x128xf32>,
    %c16 = arith.constant 16 : index
    %c0_32 = arith.constant 0 : index
    %92 = vector.load %arg3[%c16, %c0_32] : memref<18x128xf32, #tpu.memory_space<vmem>>, vector<2x128xf32>
    tpu.vector_store %arg3[%c16, %c0_32], %68 {strides = array<i32>} : memref<18x128xf32, #tpu.memory_space<vmem>>, vector<2x128xf32>,
    return
  }
  func.func @transform_0(%arg0: i32, %arg1: i32) -> (i32, i32) {
    %c0_i32 = arith.constant 0 : i32
    %c0_i32_0 = arith.constant 0 : i32
    return %arg0, %c0_i32 : i32, i32
  }
  func.func @transform_1(%arg0: i32, %arg1: i32) -> (i32, i32) {
    %c0_i32 = arith.constant 0 : i32
    return %arg0, %arg1 : i32, i32
  }
}

</mosaic_0001>

<llo_original>
// kernel: plucker_embedder.1
$region0: #{plucker_embedder.1}
  #allocation0 [shape = 'u32[]', space=smem, size = 0x4, offset = 0x4, fixed_abs, tag = 'smem constant byte address 0x4 - core index']
  #allocation1 [shape = 'u32[144,128]{1,0:T(1,128)}', space=vmem, size = 0x12000, scoped, tag = 'internal scratch']
  %s0 = inlined_call_operand.vmem [shape: f32[2,16], index: 0, kind: input, shape index: {}]
  %s1 = inlined_call_operand.vmem [shape: f32[18,256], index: 1, kind: output, shape index: {}]
  %s2 = sld [smem:[#allocation0]]
  $region71: #{plucker_embedder.1} parent=0
    _
  %s4 = ssub.s32 1, %s2
  %s5 = scalar_select 0, %s4, %s2
  $region1: #{plucker_embedder.1} parent=0
    #allocation2 [shape = 'u8[24576]{0}', space=vmem, size = 0x6000, scoped, tag = 'output window, operand 0']
    loop: start=0, step=1, limit=4
    $region2: #{plucker_embedder.1} parent=1 // loop_pre_header
      _
    $region3: #{plucker_embedder.1} parent=1 // loop_header
      %s7 = sphi 0, %s11
      %p8 = scmp.ge.s32.totalorder %s7, 4
      %s14 = sphi 0, %s26
      %s15 = sphi 0, %s22
      %s16 = sphi 0, %s14
      %s17 = sphi 0, %s15
      %s18 = sphi 0, %s16
      %s19 = sphi 0, %s17
      %s29 = sphi 0, %s31
      %s32 = sphi 0, %s29
      %s33 = sphi 0, %s32
      %s49 = sphi 0, %s33
      %s57 = sphi 0, %s59
      %s60 = sphi 0, %s57
      %s61 = sphi 0, %s60
      %s77 = sphi 0, %s61
    $region4: #{plucker_embedder.1} parent=1 // loop_header_branch
      %10 = sbr.rel (%p8) target = $region8
    $region5: #{plucker_embedder.1} parent=1 // loop_body
      %s12 = ssub.s32 %s7, 1
      %s13 = ssub.s32 %s7, 2
      %s20 = sadd.s32 1, %s15
      %p21 = scmp.ge.s32.totalorder %s20, 2
      %s22 = scalar_select %p21, 0, %s20
      %s23 = sadd.s32 1, %s14
      %s24 = scalar_select %p21, %s23, %s14
      %p25 = scmp.ge.s32.totalorder %s24, 1
      %s26 = scalar_select %p25, 0, %s24
      %s27 = ssub.s32 %s14, %s26
      %p28 = scmp.eq.s32.totalorder %s27, 0
      %s30 = sadd.s32 %s29, 1
      %s31 = scalar_select %p28, %s29, %s30
      %p34 = pneg %p28
      %p35 = scmp.eq.s32.totalorder %s7, 1
      %p36 = por %p34, %p35
      %p37 = scmp.ne.s32.totalorder %s29, %s32
      %p38 = scmp.eq.s32.totalorder %s7, 0
      %p39 = por %p37, %p38
      %p40 = scmp.ne.s32.totalorder %s29, %s32
      %p41 = scmp.eq.s32.totalorder %s12, 1
      %p42 = por %p40, %p41
      %p43 = scmp.ne.s32.totalorder %s32, %s33
      %p44 = scmp.eq.s32.totalorder %s12, 0
      %p45 = por %p43, %p44
      %p46 = scmp.ne.s32.totalorder %s32, %s33
      %p47 = scmp.eq.s32.totalorder %s13, 1
      %p48 = por %p46, %p47
      %p50 = scmp.ne.s32.totalorder %s33, %s49
      %p51 = scmp.eq.s32.totalorder %s13, 0
      %p52 = por %p50, %p51
      %s53 = ssub.s32 %s14, %s26
      %s54 = ssub.s32 %s15, %s22
      %s55 = sor.u32 %s53, %s54
      %p56 = scmp.eq.s32.totalorder %s55, 0
      %s58 = sadd.s32 %s57, 1
      %s59 = scalar_select %p56, %s57, %s58
      %p62 = pneg %p56
      %p63 = scmp.eq.s32.totalorder %s7, 1
      %p64 = por %p62, %p63
      %p65 = scmp.ne.s32.totalorder %s57, %s60
      %p66 = scmp.eq.s32.totalorder %s7, 0
      %p67 = por %p65, %p66
      %p68 = scmp.ne.s32.totalorder %s57, %s60
      %p69 = scmp.eq.s32.totalorder %s12, 1
      %p70 = por %p68, %p69
      %p71 = scmp.ne.s32.totalorder %s60, %s61
      %p72 = scmp.eq.s32.totalorder %s12, 0
      %p73 = por %p71, %p72
      %p74 = scmp.ne.s32.totalorder %s60, %s61
      %p75 = scmp.eq.s32.totalorder %s13, 1
      %p76 = por %p74, %p75
      %p78 = scmp.ne.s32.totalorder %s61, %s77
      %p79 = scmp.eq.s32.totalorder %s13, 0
      %p80 = por %p78, %p79
      %p81 = scmp.le.s32.totalorder 1, %s7
      %p82 = scmp.lt.s32.totalorder %s7, 3
      %p83 = pnand %p81, %p82
      %p84 = pneg %p83
      // Predicated region
      $region9: #{plucker_embedder.1} parent=5 // pred_check
        _
      $region10: #{plucker_embedder.1} parent=5 // pred_check_branch
        %86 = sbr.rel (%p83) target = $region12
      $region11: #{plucker_embedder.1} parent=5 // pred_region
        %s87 = ssub.s32 %s7, 1
        // Predicated region
        $region13: #{plucker_embedder.1} parent=11 // pred_check
          %p88 = pneg %p45
        $region14: #{plucker_embedder.1} parent=11 // pred_check_branch
          %90 = sbr.rel (%p88) target = $region16
        $region15: #{plucker_embedder.1} parent=11 // pred_region
          %p91 = scmp.lt.s32.totalorder %s16, 0
          %s92 = scalar_select %p91, %s16, 0
          %s93 = smul.addr %s92, 2
          %s94 = scalar_lea.vmem %s0, %s93
        $region16: #{plucker_embedder.1} parent=11 // pred_fallthru
          _
      $region12: #{plucker_embedder.1} parent=5 // pred_fallthru
        _
      %p95 = scmp.lt.s32.totalorder %s7, 2
      // Predicated region
      $region17: #{plucker_embedder.1} parent=5 // pred_check
        %p96 = pneg %p95
      $region18: #{plucker_embedder.1} parent=5 // pred_check_branch
        %98 = sbr.rel (%p96) target = $region20
      $region19: #{plucker_embedder.1} parent=5 // pred_region
        _
      $region20: #{plucker_embedder.1} parent=5 // pred_fallthru
        _
      %p99 = scmp.le.s32.totalorder 1, %s7
      %p100 = scmp.lt.s32.totalorder %s7, 3
      %p101 = pnand %p99, %p100
      %p102 = pneg %p101
      // Predicated region
      $region21: #{plucker_embedder.1} parent=5 // pred_check
        _
      $region22: #{plucker_embedder.1} parent=5 // pred_check_branch
        %104 = sbr.rel (%p101) target = $region24
      $region23: #{plucker_embedder.1} parent=5 // pred_region
        %s105 = ssub.s32 %s7, 1
        %p106 = scmp.lt.s32.totalorder %s16, 0
        %s107 = scalar_select %p106, %s16, 0
        %s108 = smul.addr %s107, 2
        %s109 = scalar_lea.vmem %s0, %s108
        %p110 = pneg %p45
        %p111 = pneg %p42
        %p112 = pneg %p73
        %p113 = pneg %p70
        %s114 = sand.u32 %s60, 1
        %s115 = sand.u32 %s60, 1
        %s116 = smul.addr %s115, 24
        %s117 = scalar_lea.vmem [#allocation2], %s116
        %p118 = scmp.lt.s32.totalorder %s16, 0
        %s119 = scalar_select %p118, %s16, 0
        %s120 = smul.addr %s119, 2
        %s121 = scalar_lea.vmem %s0, %s120
        %s122 = smul.u32 3, %s16
        %v123 = vlaneseq
        %v124 = vand.u32 %v123, 127
        %s125 = smul.u32 %s17, 128
        %v126 = vstv %s125
        %v127 = vadd.s32 %v124, %v126
        %v128 = vshra.s32 %v127, 4
        %v129 = vand.u32 %v127, 15
        %v130 = vcvt.s32.f32 %v129
        %v131 = vcvt.s32.f32 %v128
        %v132 = vld [vmem:[%s121] sm:$0x3]
        %134 = vset.pattern.permute.xlu0 2
        %135 = vperm.xlu0 %134, %v132
        %v136 = vpop.permute.xlu0 %135
        %v138 = vsub.f32 %v130, %v136
        %139 = vset.pattern.permute.xlu0 0
        %140 = vperm.xlu0 %139, %v132
        %v141 = vpop.permute.xlu0 %140
        %v143 = vmul.f32 %v138, %v141
        %144 = vset.pattern.permute.xlu0 3
        %145 = vperm.xlu0 %144, %v132
        %v146 = vpop.permute.xlu0 %145
        %v148 = vsub.f32 %v131, %v146
        %149 = vset.pattern.permute.xlu0 1
        %150 = vperm.xlu0 %149, %v132
        %v151 = vpop.permute.xlu0 %150
        %v153 = vmul.f32 %v148, %v151
        %154 = vset.pattern.permute.xlu0 4
        %155 = vperm.xlu0 %154, %v132
        %v156 = vpop.permute.xlu0 %155
        %v158 = vmul.f32 %v143, %v156
        %159 = vset.pattern.permute.xlu0 5
        %160 = vperm.xlu0 %159, %v132
        %v161 = vpop.permute.xlu0 %160
        %v163 = vmul.f32 %v153, %v161
        %v164 = vadd.f32 %v158, %v163
        %165 = vset.pattern.permute.xlu0 6
        %166 = vperm.xlu0 %165, %v132
        %v167 = vpop.permute.xlu0 %166
        %v169 = vadd.f32 %v164, %v167
        %170 = vset.pattern.permute.xlu0 7
        %171 = vperm.xlu0 %170, %v132
        %v172 = vpop.permute.xlu0 %171
        %v174 = vmul.f32 %v143, %v172
        %175 = vset.pattern.permute.xlu0 8
        %176 = vperm.xlu0 %175, %v132
        %v177 = vpop.permute.xlu0 %176
        %v179 = vmul.f32 %v153, %v177
        %v180 = vadd.f32 %v174, %v179
        %181 = vset.pattern.permute.xlu0 9
        %182 = vperm.xlu0 %181, %v132
        %v183 = vpop.permute.xlu0 %182
        %v185 = vadd.f32 %v180, %v183
        %186 = vset.pattern.permute.xlu0 10
        %187 = vperm.xlu0 %186, %v132
        %v188 = vpop.permute.xlu0 %187
        %v190 = vmul.f32 %v143, %v188
        %191 = vset.pattern.permute.xlu0 11
        %192 = vperm.xlu0 %191, %v132
        %v193 = vpop.permute.xlu0 %192
        %v195 = vmul.f32 %v153, %v193
        %v196 = vadd.f32 %v190, %v195
        %197 = vset.pattern.permute.xlu0 12
        %198 = vperm.xlu0 %197, %v132
        %v199 = vpop.permute.xlu0 %198
        %v201 = vadd.f32 %v196, %v199
        %v202 = vmul.f32 %v169, %v169
        %v203 = vmul.f32 %v185, %v185
        %v204 = vadd.f32 %v202, %v203
        %v205 = vmul.f32 %v201, %v201
        %v206 = vadd.f32 %v204, %v205
        %v207 = vrsqrt.pop %v206
        %v208 = vmul.f32 %v206, %v207
        %vm209 = vcmp.eq.f32.partialorder %v206, inf
        %v210 = vsel %vm209, %v206, %v208
        %vm211 = vcmp.eq.f32.partialorder %v206, 0.0
        %v212 = vand.u32 %v206, 2147483648
        %v213 = vsel %vm211, %v212, %v210
        %v214 = vadd.f32 %v213, 1e-08
        %v215 = vrcp.pop %v214
        %v216 = vmul.f32 %v169, %v215
        %v217 = vmul.f32 %v185, %v215
        %v218 = vmul.f32 %v201, %v215
        %219 = vset.pattern.permute.xlu0 14
        %220 = vperm.xlu0 %219, %v132
        %v221 = vpop.permute.xlu0 %220
        %v223 = vmul.f32 %v221, %v218
        %224 = vset.pattern.permute.xlu0 15
        %225 = vperm.xlu0 %224, %v132
        %v226 = vpop.permute.xlu0 %225
        %v228 = vmul.f32 %v226, %v217
        %v229 = vsub.f32 %v223, %v228
        %v230 = vmul.f32 %v226, %v216
        %231 = vset.pattern.permute.xlu0 13
        %232 = vperm.xlu0 %231, %v132
        %v233 = vpop.permute.xlu0 %232
        %v235 = vmul.f32 %v233, %v218
        %v236 = vsub.f32 %v230, %v235
        %v237 = vmul.f32 %v233, %v217
        %v238 = vmul.f32 %v221, %v216
        %v239 = vsub.f32 %v237, %v238
        %240 = vst [vmem:[%s117] sm:$0x3] %v169
        %241 = vst [vmem:[%s117 + $0x2] sm:$0x3] %v185
        %242 = vst [vmem:[%s117 + $0x4] sm:$0x3] %v201
        %243 = vst [vmem:[%s117 + $0x6] sm:$0x3] %v229
        %244 = vst [vmem:[%s117 + $0x8] sm:$0x3] %v236
        %245 = vst [vmem:[%s117 + $0xa] sm:$0x3] %v239
        %246 = vst [vmem:[%s117 + $0xc] sm:$0x3] %v216
        %247 = vst [vmem:[%s117 + $0xe] sm:$0x3] %v217
        %248 = vst [vmem:[%s117 + $0x10] sm:$0x3] %v218
        %s249 = sand.u32 %s60, 1
        %s250 = sand.u32 %s60, 1
        %s251 = smul.addr %s250, 24
        %s252 = scalar_lea.vmem [#allocation2], %s251
        // Predicated region
        $region25: #{plucker_embedder.1} parent=23 // pred_check
          %p253 = pneg %p70
        $region26: #{plucker_embedder.1} parent=23 // pred_check_branch
          %255 = sbr.rel (%p253) target = $region28
        $region27: #{plucker_embedder.1} parent=23 // pred_region
          %s256 = smul.u32 3, %s16
          %s257 = smul.addr %s256, 2
          %s258 = sadd.s32 %s17, %s257
          %s259 = smul.addr %s258, 8
          %s260 = scalar_lea.vmem %s1, %s259
          // Predicated region
          $region29: #{plucker_embedder.1} parent=27 // pred_check
            _
          $region30: #{plucker_embedder.1} parent=27 // pred_check_branch
            %262 = sbr.rel (0) target = $region32
          $region31: #{plucker_embedder.1} parent=27 // pred_region
            // Predicated region
            $region33: #{plucker_embedder.1} parent=31 // pred_check
              _
            $region34: #{plucker_embedder.1} parent=31 // pred_check_branch
              %264 = sbr.rel (0) target = $region36
            $region35: #{plucker_embedder.1} parent=31 // pred_region
              // Predicated region
              $region48: #{plucker_embedder.1} parent=35 // pred_check
                _
              $region49: #{plucker_embedder.1} parent=35 // pred_check_branch
                %284 = sbr.rel (0) target = $region51
              $region50: #{plucker_embedder.1} parent=35 // pred_region
                loop: start=0, step=1, limit=1
                $region52: #{plucker_embedder.1} parent=50 // loop_pre_header
                  _
                $region53: #{plucker_embedder.1} parent=50 // loop_header
                  %s286 = sphi 0, %s290
                  %p287 = scmp.ge.s32.totalorder %s286, 1
                  %s291 = sphi %s252, %s252
                  %s292 = sphi %s260, %s260
                $region54: #{plucker_embedder.1} parent=50 // loop_header_branch
                  %289 = sbr.rel (%p287) target = $region58
                $region55: #{plucker_embedder.1} parent=50 // loop_body
                  %v293 = vld [vmem:[%s291] sm:$0xff]
                  %294 = vst [vmem:[%s292] sm:$0xff] %v293
                  %v295 = vld [vmem:[%s291 + $0x8] sm:$0xff]
                  %296 = vst [vmem:[%s292 + $0x10] sm:$0xff] %v295
                  %v297 = vld [vmem:[%s291 + $0x10] sm:$0xff]
                  %298 = vst [vmem:[%s292 + $0x20] sm:$0xff] %v297
                $region56: #{plucker_embedder.1} parent=50 // loop_footer
                  %s290 = sadd.s32 1, %s286
                $region57: #{plucker_embedder.1} parent=50 // loop_footer_branch
                  %285 = sbr.rel target = $region53
                $region58: #{plucker_embedder.1} parent=50 // loop_exit
                  _
              $region51: #{plucker_embedder.1} parent=35 // pred_fallthru
                _
              // Predicated region
              $region59: #{plucker_embedder.1} parent=35 // pred_check
                _
              $region60: #{plucker_embedder.1} parent=35 // pred_check_branch
                %300 = sbr.rel target = $region62
              $region61: #{plucker_embedder.1} parent=35 // pred_region
                _
              $region62: #{plucker_embedder.1} parent=35 // pred_fallthru
                _
            $region36: #{plucker_embedder.1} parent=31 // pred_fallthru
              _
            // Predicated region
            $region37: #{plucker_embedder.1} parent=31 // pred_check
              _
            $region38: #{plucker_embedder.1} parent=31 // pred_check_branch
              %266 = sbr.rel target = $region40
            $region39: #{plucker_embedder.1} parent=31 // pred_region
              %s268 = ssub.s32 256, 1
              loop: start=0, step=1, limit=1
              $region41: #{plucker_embedder.1} parent=39 // loop_pre_header
                _
              $region42: #{plucker_embedder.1} parent=39 // loop_header
                %s270 = sphi 0, %s274
                %p271 = scmp.ge.s32.totalorder %s270, 1
                %s275 = sphi %s252, %s252
                %s276 = sphi %s260, %s260
              $region43: #{plucker_embedder.1} parent=39 // loop_header_branch
                %273 = sbr.rel (%p271) target = $region47
              $region44: #{plucker_embedder.1} parent=39 // loop_body
                %v277 = vld [vmem:[%s275] sm:%s268]
                %278 = vst [vmem:[%s276] sm:%s268] %v277
                %v279 = vld [vmem:[%s275 + $0x8] sm:%s268]
                %280 = vst [vmem:[%s276 + $0x10] sm:%s268] %v279
                %v281 = vld [vmem:[%s275 + $0x10] sm:%s268]
                %282 = vst [vmem:[%s276 + $0x20] sm:%s268] %v281
              $region45: #{plucker_embedder.1} parent=39 // loop_footer
                %s274 = sadd.s32 1, %s270
              $region46: #{plucker_embedder.1} parent=39 // loop_footer_branch
                %269 = sbr.rel target = $region42
              $region47: #{plucker_embedder.1} parent=39 // loop_exit
                _
            $region40: #{plucker_embedder.1} parent=31 // pred_fallthru
              _
          $region32: #{plucker_embedder.1} parent=27 // pred_fallthru
            _
          %301 = vnop
        $region28: #{plucker_embedder.1} parent=23 // pred_fallthru
          _
      $region24: #{plucker_embedder.1} parent=5 // pred_fallthru
        _
      %p302 = scmp.le.s32.totalorder 2, %s7
      // Predicated region
      $region63: #{plucker_embedder.1} parent=5 // pred_check
        %p303 = pneg %p302
      $region64: #{plucker_embedder.1} parent=5 // pred_check_branch
        %305 = sbr.rel (%p303) target = $region66
      $region65: #{plucker_embedder.1} parent=5 // pred_region
        %s306 = ssub.s32 %s7, 2
        // Predicated region
        $region67: #{plucker_embedder.1} parent=65 // pred_check
          %p307 = pneg %p76
        $region68: #{plucker_embedder.1} parent=65 // pred_check_branch
          %309 = sbr.rel (%p307) target = $region70
        $region69: #{plucker_embedder.1} parent=65 // pred_region
          %s310 = sand.u32 %s61, 1
          %s311 = sand.u32 %s61, 1
          %s312 = smul.addr %s311, 24
          %s313 = scalar_lea.vmem [#allocation2], %s312
        $region70: #{plucker_embedder.1} parent=65 // pred_fallthru
          _
      $region66: #{plucker_embedder.1} parent=5 // pred_fallthru
        _
    $region6: #{plucker_embedder.1} parent=1 // loop_footer
      %s11 = sadd.s32 1, %s7
    $region7: #{plucker_embedder.1} parent=1 // loop_footer_branch
      %6 = sbr.rel target = $region3
    $region8: #{plucker_embedder.1} parent=1 // loop_exit
      _

</llo_original>
